<compile_context>
chip_gen: v6e
topology: v6e:2x2x1
jax: 0.10.0
libtpu: 0.0.40
codegen_flags: <defaults>
</compile_context>

<pallas_src>
import functools

import jax
import jax.numpy as jnp
from jax.experimental import pallas as pl
from jax.experimental.pallas import tpu as pltpu

_LANE = 128
_SUBLANE = 8


def _round_up(x, m):
    return ((x + m - 1) // m) * m


# ---------------------------------------------------------------------------
# Kernel
# ---------------------------------------------------------------------------
def _fused_fwd_kernel(obs_ref, w1_ref, b1_ref, w2_ref, b2_ref,
                      wout_ref, bout_ref, out_ref, *, vpu_first_layer):
    obs = obs_ref[...]                                          # (TM, obs_dim) f32

    if vpu_first_layer:
        # obs_dim == 1: (TM,1) * (1,H_pad) broadcast on the VPU; skip the
        # K=1 systolic pass entirely.  All f32 (v5e VPU has no bf16).
        h1 = obs * w1_ref[...] + b1_ref[...]
    else:
        h1 = jnp.dot(obs.astype(w1_ref.dtype), w1_ref[...],
                     preferred_element_type=jnp.float32) + b1_ref[...]
    h1 = jnp.maximum(h1, 0.0)

    h2 = jnp.dot(h1.astype(w2_ref.dtype), w2_ref[...],
                 preferred_element_type=jnp.float32) + b2_ref[...]
    h2 = jnp.maximum(h2, 0.0)

    # Fused head: cols [0,A)=mu, col A = value, remaining cols = padding.
    # Single unmasked 128-lane store; f32 accumulation, cast only at the store.
    out = jnp.dot(h2.astype(wout_ref.dtype), wout_ref[...],
                  preferred_element_type=jnp.float32) + bout_ref[...]
    out_ref[...] = out.astype(out_ref.dtype)


# ---------------------------------------------------------------------------
# One-time parameter preparation (hoisted out of the per-call path)
# ---------------------------------------------------------------------------
def prepare_params(params, *, matmul_dtype=jnp.float32):
    """Pad / fuse the module parameters once; reuse the result across calls."""
    obs_dim, H = params["w1"].shape
    A = params["wmu"].shape[1]
    H_pad = _round_up(H, _LANE)
    OUT_pad = _round_up(A + 1, _LANE)          # mu | value | pad

    # Zero-pad hidden to a 128-lane multiple: padded units are relu(0) = 0 and
    # feed zero weights downstream, so results are bit-identical.
    w1 = jnp.pad(params["w1"].astype(jnp.float32), ((0, 0), (0, H_pad - H)))
    b1 = jnp.pad(params["b1"].astype(jnp.float32), ((0, 0), (0, H_pad - H)))
    w2 = jnp.pad(params["w2"].astype(jnp.float32),
                 ((0, H_pad - H), (0, H_pad - H)))
    b2 = jnp.pad(params["b2"].astype(jnp.float32), ((0, 0), (0, H_pad - H)))

    # Fused output head (mu | value | pad).
    w_out = jnp.zeros((H_pad, OUT_pad), jnp.float32)
    w_out = w_out.at[:H, :A].set(params["wmu"].astype(jnp.float32))
    w_out = w_out.at[:H, A].set(params["wv"].astype(jnp.float32)[:, 0])
    b_out = jnp.zeros((1, OUT_pad), jnp.float32)
    b_out = b_out.at[0, :A].set(params["bmu"].astype(jnp.float32)[0])
    b_out = b_out.at[0, A].set(params["bv"].astype(jnp.float32)[0, 0])

    # std is batch-constant: compute the row once; wrapper broadcasts it.
    std_row = jnp.exp(params["log_std"].astype(jnp.float32))    # (1, A)

    # Optional MXU feed dtype (f32 accumulation kept in-kernel).  NOTE: with
    # bf16 weights, mu/value lose precision -- loosen tolerances on that path.
    if obs_dim > 1:
        w1 = w1.astype(matmul_dtype)
    w2 = w2.astype(matmul_dtype)
    w_out = w_out.astype(matmul_dtype)

    return {"w1": w1, "b1": b1, "w2": w2, "b2": b2,
            "w_out": w_out, "b_out": b_out, "std_row": std_row}


# ---------------------------------------------------------------------------
# Per-call forward
# ---------------------------------------------------------------------------
def _choose_tile(B, tm):
    if tm is None:
        target = 2048
        n_tiles = pl.cdiv(B, target)
        if B >= 1024:
            n_tiles = max(n_tiles, 2)          # keep both v7x TCs busy
        tm = _round_up(pl.cdiv(B, n_tiles), _SUBLANE)
    tm = max(_SUBLANE, _round_up(tm, _SUBLANE))
    B_pad = _round_up(B, tm)
    return tm, B_pad, B_pad // tm


def task_generator_forward(obs, prepared, *, tm=None, out_dtype=jnp.float32):
    """TaskGenerator.forward: returns (mu, std, value).

    obs: (B, obs_dim) float32; a 1-D (obs_dim,) obs is promoted to (1, obs_dim),
         mirroring `obs.unsqueeze(0)` in the PyTorch module.
    prepared: output of prepare_params(params) (built once, reused).
    """
    if obs.ndim == 1:
        obs = obs[None, :]
    obs = obs.astype(jnp.float32)
    B, obs_dim = obs.shape

    assert obs_dim == prepared["w1"].shape[0]
    H_pad = prepared["w1"].shape[1]
    OUT_pad = prepared["w_out"].shape[1]
    A = prepared["std_row"].shape[1]

    tm, B_pad, n_tiles = _choose_tile(B, tm)
    obs_p = jnp.pad(obs, ((0, B_pad - B), (0, 0)))

    vpu_first = (obs_dim == 1)
    kernel = functools.partial(_fused_fwd_kernel, vpu_first_layer=vpu_first)

    fused = pl.pallas_call(
        kernel,
        out_shape=jax.ShapeDtypeStruct((B_pad, OUT_pad), out_dtype),
        grid=(n_tiles,),
        in_specs=[
            pl.BlockSpec((tm, obs_dim), lambda i: (i, 0)),       # obs tile
            pl.BlockSpec((obs_dim, H_pad), lambda i: (0, 0)),    # w1 (resident)
            pl.BlockSpec((1, H_pad), lambda i: (0, 0)),          # b1
            pl.BlockSpec((H_pad, H_pad), lambda i: (0, 0)),      # w2
            pl.BlockSpec((1, H_pad), lambda i: (0, 0)),          # b2
            pl.BlockSpec((H_pad, OUT_pad), lambda i: (0, 0)),    # fused head W
            pl.BlockSpec((1, OUT_pad), lambda i: (0, 0)),        # fused head b
        ],
        out_specs=pl.BlockSpec((tm, OUT_pad), lambda i: (i, 0)),
        compiler_params=pltpu.CompilerParams(
            dimension_semantics=("parallel",)),
    )(obs_p, prepared["w1"], prepared["b1"], prepared["w2"], prepared["b2"],
      prepared["w_out"], prepared["b_out"])

    mu = fused[:B, :A]
    value = fused[:B, A:A + 1]
    # std is constant across the batch: no per-row materialization in the slab.
    std = jnp.broadcast_to(prepared["std_row"].astype(out_dtype), (B, A))
    return mu, std, value


# ---------------------------------------------------------------------------
# Reference + synthetic init
# ---------------------------------------------------------------------------
def init_params(key, obs_dim, hidden_dim, action_dim):
    """Deterministic synthetic parameter init (shapes match the nn.Module)."""
    ks = jax.random.split(key, 8)
    scale = 0.1
    return {
        "w1": scale * jax.random.normal(ks[0], (obs_dim, hidden_dim), jnp.float32),
        "b1": scale * jax.random.normal(ks[1], (1, hidden_dim), jnp.float32),
        "w2": scale * jax.random.normal(ks[2], (hidden_dim, hidden_dim), jnp.float32),
        "b2": scale * jax.random.normal(ks[3], (1, hidden_dim), jnp.float32),
        "wmu": scale * jax.random.normal(ks[4], (hidden_dim, action_dim), jnp.float32),
        "bmu": scale * jax.random.normal(ks[5], (1, action_dim), jnp.float32),
        # nn.Parameter(torch.zeros(action_dim)) -> zeros
        "log_std": jnp.zeros((1, action_dim), jnp.float32),
        "wv": scale * jax.random.normal(ks[6], (hidden_dim, 1), jnp.float32),
        "bv": scale * jax.random.normal(ks[7], (1, 1), jnp.float32),
    }


def reference_forward(obs, params):
    if obs.ndim == 1:
        obs = obs[None, :]
    h = jnp.maximum(obs @ params["w1"] + params["b1"], 0.0)
    h = jnp.maximum(h @ params["w2"] + params["b2"], 0.0)
    mu = h @ params["wmu"] + params["bmu"]
    std = jnp.broadcast_to(jnp.exp(params["log_std"]), mu.shape)
    value = h @ params["wv"] + params["bv"]
    return mu, std, value


if __name__ == "__main__":
    # Module-implied small sizes:
    #   obs_dim = 1 (default), hidden_dim = 32,
    #   2 param_defs, max_gen_tasks = 10 -> action_dim = 10 * 3 = 30
    obs_dim = 1
    hidden_dim = 32
    n_param_defs = 2
    max_gen_tasks = 10
    action_dim = max_gen_tasks * (n_param_defs + 1)
    batch = 2

    key = jax.random.PRNGKey(0)
    k_obs, k_obs2, k_par = jax.random.split(key, 3)
    obs = jax.random.normal(k_obs, (batch, obs_dim), jnp.float32)
    params = init_params(k_par, obs_dim, hidden_dim, action_dim)

    # One-time parameter preparation (hoisted out of the per-call path).
    prepared = prepare_params(params)
    jax.block_until_ready(prepared)

    fwd = jax.jit(task_generator_forward, static_argnames=("tm", "out_dtype"))

    # Small-batch check (single grid step).
    mu, std, value = fwd(obs, prepared)
    jax.block_until_ready((mu, std, value))
    mu_r, std_r, value_r = reference_forward(obs, params)
    assert mu.shape == (batch, action_dim)
    assert std.shape == (batch, action_dim)
    assert value.shape == (batch, 1)
    assert jnp.allclose(mu, mu_r, atol=1e-5, rtol=1e-5)
    assert jnp.allclose(std, std_r, atol=1e-5, rtol=1e-5)
    assert jnp.allclose(value, value_r, atol=1e-5, rtol=1e-5)

    # Odd batch (balanced tiling: one ~536-row tile, only 6 padded rows).
    mid_b = 530
    obs2 = jax.random.normal(k_obs2, (mid_b, obs_dim), jnp.float32)
    mu2, std2, value2 = fwd(obs2, prepared)
    jax.block_until_ready((mu2, std2, value2))
    mu2_r, std2_r, value2_r = reference_forward(obs2, params)
    assert mu2.shape == (mid_b, action_dim)
    assert jnp.allclose(mu2, mu2_r, atol=1e-5, rtol=1e-5)
    assert jnp.allclose(std2, std2_r, atol=1e-5, rtol=1e-5)
    assert jnp.allclose(value2, value2_r, atol=1e-5, rtol=1e-5)

    # Larger batch: balanced 2-tile grid (megacore / v7x dual-TC friendly),
    # exercised once in f32 and once with the bf16 output-store path.
    big_b = 2600
    obs3 = jax.random.normal(k_obs2, (big_b, obs_dim), jnp.float32)
    mu3, std3, value3 = fwd(obs3, prepared)
    jax.block_until_ready((mu3, std3, value3))
    mu3_r, std3_r, value3_r = reference_forward(obs3, params)
    assert jnp.allclose(mu3, mu3_r, atol=1e-5, rtol=1e-5)
    assert jnp.allclose(std3, std3_r, atol=1e-5, rtol=1e-5)
    assert jnp.allclose(value3, value3_r, atol=1e-5, rtol=1e-5)

    # bf16 output store (halved HBM writeback); looser tolerances.
    mu4, std4, value4 = fwd(obs3, prepared, out_dtype=jnp.bfloat16)
    jax.block_until_ready((mu4, std4, value4))
    assert mu4.dtype == jnp.bfloat16
    assert jnp.allclose(mu4.astype(jnp.float32), mu3_r, atol=2e-2, rtol=2e-2)
    assert jnp.allclose(value4.astype(jnp.float32), value3_r, atol=2e-2, rtol=2e-2)

    # TODO(synk): act()/evaluate_actions() Normal sampling/log-prob/entropy and
    # TaskSpec decoding are host-side control/distribution logic, not ported.
    print("KERNEL_OK")
</pallas_src>

<mosaic_0001>
module attributes {stable_mosaic.version = 11 : i64} {
  func.func @_fused_fwd_kernel(%arg0: i32, %arg1: memref<8x1xf32, #tpu.memory_space<vmem>>, %arg2: memref<1x128xf32, #tpu.memory_space<vmem>>, %arg3: memref<1x128xf32, #tpu.memory_space<vmem>>, %arg4: memref<128x128xf32, #tpu.memory_space<vmem>>, %arg5: memref<1x128xf32, #tpu.memory_space<vmem>>, %arg6: memref<128x128xf32, #tpu.memory_space<vmem>>, %arg7: memref<1x128xf32, #tpu.memory_space<vmem>>, %arg8: memref<8x128xf32, #tpu.memory_space<vmem>>) attributes {dimension_semantics = [#tpu.dimension_semantics<parallel>], iteration_bounds = array<i64: 1>, scalar_prefetch = 0 : i64, scratch_operands = 0 : i64, tpu.core_type = #tpu.core_type<tc>, window_params = [{transform_indices = @transform_0, window_bounds = array<i64: 8, 1>}, {pipeline_mode = #tpu.pipeline_mode<synchronous>, transform_indices = @transform_1, window_bounds = array<i64: 1, 128>}, {pipeline_mode = #tpu.pipeline_mode<synchronous>, transform_indices = @transform_2, window_bounds = array<i64: 1, 128>}, {pipeline_mode = #tpu.pipeline_mode<synchronous>, transform_indices = @transform_3, window_bounds = array<i64: 128, 128>}, {pipeline_mode = #tpu.pipeline_mode<synchronous>, transform_indices = @transform_4, window_bounds = array<i64: 1, 128>}, {pipeline_mode = #tpu.pipeline_mode<synchronous>, transform_indices = @transform_5, window_bounds = array<i64: 128, 128>}, {pipeline_mode = #tpu.pipeline_mode<synchronous>, transform_indices = @transform_6, window_bounds = array<i64: 1, 128>}, {transform_indices = @transform_7, window_bounds = array<i64: 8, 128>}]} {
    %c0 = arith.constant 0 : index
    %c0_0 = arith.constant 0 : index
    %0 = vector.load %arg1[%c0, %c0_0] : memref<8x1xf32, #tpu.memory_space<vmem>>, vector<8x1xf32>
    %c0_1 = arith.constant 0 : index
    %c0_2 = arith.constant 0 : index
    %1 = vector.load %arg2[%c0_1, %c0_2] : memref<1x128xf32, #tpu.memory_space<vmem>>, vector<1x128xf32>
    %2 = vector.broadcast %0 : vector<8x1xf32> to vector<8x128xf32>
    %3 = vector.broadcast %1 : vector<1x128xf32> to vector<8x128xf32>
    %4 = arith.mulf %2, %3 : vector<8x128xf32>
    %c0_3 = arith.constant 0 : index
    %c0_4 = arith.constant 0 : index
    %5 = vector.load %arg3[%c0_3, %c0_4] : memref<1x128xf32, #tpu.memory_space<vmem>>, vector<1x128xf32>
    %6 = vector.broadcast %5 : vector<1x128xf32> to vector<8x128xf32>
    %7 = arith.addf %4, %6 : vector<8x128xf32>
    %cst = arith.constant 0.000000e+00 : f32
    %8 = vector.broadcast %cst : f32 to vector<8x128xf32>
    %9 = arith.maximumf %7, %8 : vector<8x128xf32>
    %c0_5 = arith.constant 0 : index
    %c0_6 = arith.constant 0 : index
    %10 = vector.load %arg4[%c0_5, %c0_6] : memref<128x128xf32, #tpu.memory_space<vmem>>, vector<128x128xf32>
    %cst_7 = arith.constant dense<0.000000e+00> : vector<8x128xf32>
    %11 = tpu.matmul %9, %10, %cst_7 {dimension_numbers = #tpu.dot_dimension_numbers<[1], [0], [0], [1], [0, 0, 1, 1], [], []>} : vector<8x128xf32>, vector<128x128xf32>, vector<8x128xf32> -> vector<8x128xf32>
    %c0_8 = arith.constant 0 : index
    %c0_9 = arith.constant 0 : index
    %12 = vector.load %arg5[%c0_8, %c0_9] : memref<1x128xf32, #tpu.memory_space<vmem>>, vector<1x128xf32>
    %13 = vector.broadcast %12 : vector<1x128xf32> to vector<8x128xf32>
    %14 = arith.addf %11, %13 : vector<8x128xf32>
    %cst_10 = arith.constant 0.000000e+00 : f32
    %15 = vector.broadcast %cst_10 : f32 to vector<8x128xf32>
    %16 = arith.maximumf %14, %15 : vector<8x128xf32>
    %c0_11 = arith.constant 0 : index
    %c0_12 = arith.constant 0 : index
    %17 = vector.load %arg6[%c0_11, %c0_12] : memref<128x128xf32, #tpu.memory_space<vmem>>, vector<128x128xf32>
    %cst_13 = arith.constant dense<0.000000e+00> : vector<8x128xf32>
    %18 = tpu.matmul %16, %17, %cst_13 {dimension_numbers = #tpu.dot_dimension_numbers<[1], [0], [0], [1], [0, 0, 1, 1], [], []>} : vector<8x128xf32>, vector<128x128xf32>, vector<8x128xf32> -> vector<8x128xf32>
    %c0_14 = arith.constant 0 : index
    %c0_15 = arith.constant 0 : index
    %19 = vector.load %arg7[%c0_14, %c0_15] : memref<1x128xf32, #tpu.memory_space<vmem>>, vector<1x128xf32>
    %20 = vector.broadcast %19 : vector<1x128xf32> to vector<8x128xf32>
    %21 = arith.addf %18, %20 : vector<8x128xf32>
    %c0_16 = arith.constant 0 : index
    %c0_17 = arith.constant 0 : index
    %22 = vector.load %arg8[%c0_16, %c0_17] : memref<8x128xf32, #tpu.memory_space<vmem>>, vector<8x128xf32>
    tpu.vector_store %arg8[%c0_16, %c0_17], %21 {strides = array<i32>} : memref<8x128xf32, #tpu.memory_space<vmem>>, vector<8x128xf32>,
    return
  }
  func.func @transform_0(%arg0: i32) -> (i32, i32) {
    %c0_i32 = arith.constant 0 : i32
    %c0_i32_0 = arith.constant 0 : i32
    return %arg0, %c0_i32 : i32, i32
  }
  func.func @transform_1(%arg0: i32) -> (i32, i32) {
    %c0_i32 = arith.constant 0 : i32
    %c0_i32_0 = arith.constant 0 : i32
    %c0_i32_1 = arith.constant 0 : i32
    return %c0_i32, %c0_i32_0 : i32, i32
  }
  func.func @transform_2(%arg0: i32) -> (i32, i32) {
    %c0_i32 = arith.constant 0 : i32
    %c0_i32_0 = arith.constant 0 : i32
    %c0_i32_1 = arith.constant 0 : i32
    return %c0_i32, %c0_i32_0 : i32, i32
  }
  func.func @transform_3(%arg0: i32) -> (i32, i32) {
    %c0_i32 = arith.constant 0 : i32
    %c0_i32_0 = arith.constant 0 : i32
    %c0_i32_1 = arith.constant 0 : i32
    return %c0_i32, %c0_i32_0 : i32, i32
  }
  func.func @transform_4(%arg0: i32) -> (i32, i32) {
    %c0_i32 = arith.constant 0 : i32
    %c0_i32_0 = arith.constant 0 : i32
    %c0_i32_1 = arith.constant 0 : i32
    return %c0_i32, %c0_i32_0 : i32, i32
  }
  func.func @transform_5(%arg0: i32) -> (i32, i32) {
    %c0_i32 = arith.constant 0 : i32
    %c0_i32_0 = arith.constant 0 : i32
    %c0_i32_1 = arith.constant 0 : i32
    return %c0_i32, %c0_i32_0 : i32, i32
  }
  func.func @transform_6(%arg0: i32) -> (i32, i32) {
    %c0_i32 = arith.constant 0 : i32
    %c0_i32_0 = arith.constant 0 : i32
    %c0_i32_1 = arith.constant 0 : i32
    return %c0_i32, %c0_i32_0 : i32, i32
  }
  func.func @transform_7(%arg0: i32) -> (i32, i32) {
    %c0_i32 = arith.constant 0 : i32
    %c0_i32_0 = arith.constant 0 : i32
    return %arg0, %c0_i32 : i32, i32
  }
}

</mosaic_0001>

<llo_original>
// kernel: task_generator_forward.1
$region0: #{task_generator_forward.1}
  #allocation0 [shape = 'u32[]', space=smem, size = 0x4, offset = 0x4, fixed_abs, tag = 'smem constant byte address 0x4 - core index']
  #allocation1 [shape = 'u32[144,128]{1,0:T(1,128)}', space=vmem, size = 0x12000, scoped, tag = 'internal scratch']
  %s0 = inlined_call_operand.vmem [shape: f32[8,1], index: 0, kind: input, shape index: {}]
  %s1 = inlined_call_operand.vmem [shape: f32[1,128], index: 1, kind: input, shape index: {}]
  %s2 = inlined_call_operand.vmem [shape: f32[1,128], index: 2, kind: input, shape index: {}]
  %s3 = inlined_call_operand.hbm [shape: f32[128,128], index: 3, kind: input, shape index: {}]
  %s4 = inlined_call_operand.vmem [shape: f32[1,128], index: 4, kind: input, shape index: {}]
  %s5 = inlined_call_operand.hbm [shape: f32[128,128], index: 5, kind: input, shape index: {}]
  %s6 = inlined_call_operand.vmem [shape: f32[1,128], index: 6, kind: input, shape index: {}]
  %s7 = inlined_call_operand.vmem [shape: f32[8,128], index: 7, kind: output, shape index: {}]
  %s8 = sld [smem:[#allocation0]]
  $region46: #{task_generator_forward.1} parent=0
    _
  %s10 = ssub.s32 1, %s8
  %s11 = scalar_select 0, %s10, %s8
  $region1: #{task_generator_forward.1} parent=0
    #allocation2 [shape = 'u8[65536]{0}', space=vmem, size = 0x10000, scoped, tag = 'input window, operand 3, single buffered']
    #allocation3 [shape = 's32[1]{0}', space=sflag, size = 0x4, scoped, tag = 'scoped memory for task_generator_forward.1']
    #allocation4 [shape = 'u8[65536]{0}', space=vmem, size = 0x10000, scoped, tag = 'input window, operand 5, single buffered']
    #allocation5 [shape = 's32[1]{0}', space=sflag, size = 0x4, scoped, tag = 'scoped memory for task_generator_forward.1']
    %12 = vsyncpa [#allocation3], 0
    %13 = vsyncpa [#allocation5], 0
    // Predicated region
    $region2: #{task_generator_forward.1} parent=1 // pred_check
      _
    $region3: #{task_generator_forward.1} parent=1 // pred_check_branch
      %15 = sbr.rel (0) target = $region5
    $region4: #{task_generator_forward.1} parent=1 // pred_region
      _
    $region5: #{task_generator_forward.1} parent=1 // pred_fallthru
      _
    // Predicated region
    $region6: #{task_generator_forward.1} parent=1 // pred_check
      _
    $region7: #{task_generator_forward.1} parent=1 // pred_check_branch
      %17 = sbr.rel (0) target = $region9
    $region8: #{task_generator_forward.1} parent=1 // pred_region
      _
    $region9: #{task_generator_forward.1} parent=1 // pred_fallthru
      _
    // Predicated region
    $region10: #{task_generator_forward.1} parent=1 // pred_check
      _
    $region11: #{task_generator_forward.1} parent=1 // pred_check_branch
      %19 = sbr.rel (0) target = $region13
    $region12: #{task_generator_forward.1} parent=1 // pred_region
      _
    $region13: #{task_generator_forward.1} parent=1 // pred_fallthru
      _
    // Predicated region
    $region14: #{task_generator_forward.1} parent=1 // pred_check
      _
    $region15: #{task_generator_forward.1} parent=1 // pred_check_branch
      %21 = sbr.rel (0) target = $region17
    $region16: #{task_generator_forward.1} parent=1 // pred_region
      %s23 = ssub.s32 2048, 2048
      %24 = vsyncadd [#allocation3], %s23
      %s25 = sshll.u32 [#allocation2], 4
      %s26 = int_to_ptr.vmem [resolvable:$true] %s25
      %31 = dma.hbm_to_vmem [thread:$0]  %s3, 2048, %s26, [#allocation3], 128, 128, 8
    $region17: #{task_generator_forward.1} parent=1 // pred_fallthru
      _
    // Predicated region
    $region18: #{task_generator_forward.1} parent=1 // pred_check
      _
    $region19: #{task_generator_forward.1} parent=1 // pred_check_branch
      %33 = sbr.rel (0) target = $region21
    $region20: #{task_generator_forward.1} parent=1 // pred_region
      _
    $region21: #{task_generator_forward.1} parent=1 // pred_fallthru
      _
    // Predicated region
    $region22: #{task_generator_forward.1} parent=1 // pred_check
      _
    $region23: #{task_generator_forward.1} parent=1 // pred_check_branch
      %35 = sbr.rel (0) target = $region25
    $region24: #{task_generator_forward.1} parent=1 // pred_region
      %s37 = ssub.s32 2048, 2048
      %38 = vsyncadd [#allocation5], %s37
      %s39 = sshll.u32 [#allocation4], 4
      %s40 = int_to_ptr.vmem [resolvable:$true] %s39
      %45 = dma.hbm_to_vmem [thread:$0]  %s5, 2048, %s40, [#allocation5], 128, 128, 8
    $region25: #{task_generator_forward.1} parent=1 // pred_fallthru
      _
    // Predicated region
    $region26: #{task_generator_forward.1} parent=1 // pred_check
      _
    $region27: #{task_generator_forward.1} parent=1 // pred_check_branch
      %47 = sbr.rel (0) target = $region29
    $region28: #{task_generator_forward.1} parent=1 // pred_region
      _
    $region29: #{task_generator_forward.1} parent=1 // pred_fallthru
      _
    // Predicated region
    $region30: #{task_generator_forward.1} parent=1 // pred_check
      _
    $region31: #{task_generator_forward.1} parent=1 // pred_check_branch
      %49 = sbr.rel (0) target = $region33
    $region32: #{task_generator_forward.1} parent=1 // pred_region
      %50 = dma.done [#allocation3], 2048
    $region33: #{task_generator_forward.1} parent=1 // pred_fallthru
      _
    // Predicated region
    $region34: #{task_generator_forward.1} parent=1 // pred_check
      _
    $region35: #{task_generator_forward.1} parent=1 // pred_check_branch
      %52 = sbr.rel (0) target = $region37
    $region36: #{task_generator_forward.1} parent=1 // pred_region
      %53 = dma.done [#allocation5], 2048
    $region37: #{task_generator_forward.1} parent=1 // pred_fallthru
      _
    %v54 = vld [vmem:[%s0] sm:$0xff]
    %v55 = vld [vmem:[%s1] sm:$0x1]
    %57 = vset.pattern.permute.xlu0 0
    %58 = vperm.xlu0 %57, %v54
    %v59 = vpop.permute.xlu0 %58
    %v62 = vlaneseq
    %v63 = vshrl.u32 %v62, 7
    %v64 = vsub.s32 0, %v63
    %v65 = vrot.slane %v55, %v64
    %v67 = vmul.f32 %v59, %v65
    %v68 = vld [vmem:[%s2] sm:$0x1]
    %v70 = vlaneseq
    %v71 = vshrl.u32 %v70, 7
    %v72 = vsub.s32 0, %v71
    %v73 = vrot.slane %v68, %v72
    %v75 = vadd.f32 %v67, %v73
    %v76 = vmax.f32 %v75, 0.0
    %v77 = vld [vmem:[#allocation2] sm:$0xff]
    %v78 = vld [vmem:[#allocation2 + $0x8] sm:$0xff]
    %v79 = vld [vmem:[#allocation2 + $0x10] sm:$0xff]
    %v80 = vld [vmem:[#allocation2 + $0x18] sm:$0xff]
    %v81 = vld [vmem:[#allocation2 + $0x20] sm:$0xff]
    %v82 = vld [vmem:[#allocation2 + $0x28] sm:$0xff]
    %v83 = vld [vmem:[#allocation2 + $0x30] sm:$0xff]
    %v84 = vld [vmem:[#allocation2 + $0x38] sm:$0xff]
    %v85 = vld [vmem:[#allocation2 + $0x40] sm:$0xff]
    %v86 = vld [vmem:[#allocation2 + $0x48] sm:$0xff]
    %v87 = vld [vmem:[#allocation2 + $0x50] sm:$0xff]
    %v88 = vld [vmem:[#allocation2 + $0x58] sm:$0xff]
    %v89 = vld [vmem:[#allocation2 + $0x60] sm:$0xff]
    %v90 = vld [vmem:[#allocation2 + $0x68] sm:$0xff]
    %v91 = vld [vmem:[#allocation2 + $0x70] sm:$0xff]
    %v92 = vld [vmem:[#allocation2 + $0x78] sm:$0xff]
    %v93 = vld [vmem:[%s4] sm:$0x1]
    %v95 = vlaneseq
    %v96 = vshrl.u32 %v95, 7
    %v97 = vsub.s32 0, %v96
    %v98 = vrot.slane %v93, %v97
    %100 = vmatprep.subr.mxu0 0.0
    %101 = vmatpush1.msra.mxu0 %v92
    %102 = vmatprep.subr.mxu0 0.0
    %103 = vmatpush1.msra.mxu0 %v91
    %104 = vmatprep.subr.mxu0 0.0
    %105 = vmatpush1.msra.mxu0 %v90
    %106 = vmatprep.subr.mxu0 0.0
    %107 = vmatpush1.msra.mxu0 %v89
    %108 = vmatprep.subr.mxu0 0.0
    %109 = vmatpush1.msra.mxu0 %v88
    %110 = vmatprep.subr.mxu0 0.0
    %111 = vmatpush1.msra.mxu0 %v87
    %112 = vmatprep.subr.mxu0 0.0
    %113 = vmatpush1.msra.mxu0 %v86
    %114 = vmatprep.subr.mxu0 0.0
    %115 = vmatpush1.msra.mxu0 %v85
    %116 = vmatprep.subr.mxu0 0.0
    %117 = vmatpush1.msra.mxu0 %v84
    %118 = vmatprep.subr.mxu0 0.0
    %119 = vmatpush1.msra.mxu0 %v83
    %120 = vmatprep.subr.mxu0 0.0
    %121 = vmatpush1.msra.mxu0 %v82
    %122 = vmatprep.subr.mxu0 0.0
    %123 = vmatpush1.msra.mxu0 %v81
    %124 = vmatprep.subr.mxu0 0.0
    %125 = vmatpush1.msra.mxu0 %v80
    %126 = vmatprep.subr.mxu0 0.0
    %127 = vmatpush1.msra.mxu0 %v79
    %128 = vmatprep.subr.mxu0 0.0
    %129 = vmatpush1.msra.mxu0 %v78
    %130 = vmatprep.subr.mxu0 0.0
    %131 = vmatpush1.msra.mxu0 %v77
    %132 = vmatprep.subr.mxu0 0.0
    %133 = vmatpush2.msra.mxu0 0.0
    %134 = vmatprep.subr.mxu0 0.0
    %135 = vmatpush2.msra.mxu0 0.0
    %136 = vmatprep.subr.mxu0 0.0
    %137 = vmatpush2.msra.mxu0 0.0
    %138 = vmatprep.subr.mxu0 0.0
    %139 = vmatpush2.msra.mxu0 0.0
    %140 = vmatprep.subr.mxu0 0.0
    %141 = vmatpush2.msra.mxu0 0.0
    %142 = vmatprep.subr.mxu0 0.0
    %143 = vmatpush2.msra.mxu0 0.0
    %144 = vmatprep.subr.mxu0 0.0
    %145 = vmatpush2.msra.mxu0 0.0
    %146 = vmatprep.subr.mxu0 0.0
    %147 = vmatpush2.msra.mxu0 0.0
    %148 = vmatprep.subr.mxu0 0.0
    %149 = vmatpush2.msra.mxu0 0.0
    %150 = vmatprep.subr.mxu0 0.0
    %151 = vmatpush2.msra.mxu0 0.0
    %152 = vmatprep.subr.mxu0 0.0
    %153 = vmatpush2.msra.mxu0 0.0
    %154 = vmatprep.subr.mxu0 0.0
    %155 = vmatpush2.msra.mxu0 0.0
    %156 = vmatprep.subr.mxu0 0.0
    %157 = vmatpush2.msra.mxu0 0.0
    %158 = vmatprep.subr.mxu0 0.0
    %159 = vmatpush2.msra.mxu0 0.0
    %160 = vmatprep.subr.mxu0 0.0
    %161 = vmatpush2.msra.mxu0 0.0
    %162 = vmatprep.subr.mxu0 0.0
    %163 = vmatpush2.msra.mxu0 0.0
    %164 = vmatprep.mubr.f32.mxu0 0.0
    %165 = vmatmul.mubr.f32.gmra.mxu0 %v76
    %v166 = vpop.f32.mrf.mxu0
    %v167 = vadd.f32 %v98, %v166
    %v168 = vpop.f32.mrf.mxu0
    %169 = vdwg.mxu0
    %v170 = vmax.f32 %v167, 0.0
    %v171 = vld [vmem:[#allocation4] sm:$0xff]
    %v172 = vld [vmem:[#allocation4 + $0x8] sm:$0xff]
    %v173 = vld [vmem:[#allocation4 + $0x10] sm:$0xff]
    %v174 = vld [vmem:[#allocation4 + $0x18] sm:$0xff]
    %v175 = vld [vmem:[#allocation4 + $0x20] sm:$0xff]
    %v176 = vld [vmem:[#allocation4 + $0x28] sm:$0xff]
    %v177 = vld [vmem:[#allocation4 + $0x30] sm:$0xff]
    %v178 = vld [vmem:[#allocation4 + $0x38] sm:$0xff]
    %v179 = vld [vmem:[#allocation4 + $0x40] sm:$0xff]
    %v180 = vld [vmem:[#allocation4 + $0x48] sm:$0xff]
    %v181 = vld [vmem:[#allocation4 + $0x50] sm:$0xff]
    %v182 = vld [vmem:[#allocation4 + $0x58] sm:$0xff]
    %v183 = vld [vmem:[#allocation4 + $0x60] sm:$0xff]
    %v184 = vld [vmem:[#allocation4 + $0x68] sm:$0xff]
    %v185 = vld [vmem:[#allocation4 + $0x70] sm:$0xff]
    %v186 = vld [vmem:[#allocation4 + $0x78] sm:$0xff]
    %v187 = vld [vmem:[%s6] sm:$0x1]
    %v189 = vlaneseq
    %v190 = vshrl.u32 %v189, 7
    %v191 = vsub.s32 0, %v190
    %v192 = vrot.slane %v187, %v191
    %194 = vmatprep.subr.mxu0 0.0
    %195 = vmatpush1.msra.mxu0 %v186
    %196 = vmatprep.subr.mxu0 0.0
    %197 = vmatpush1.msra.mxu0 %v185
    %198 = vmatprep.subr.mxu0 0.0
    %199 = vmatpush1.msra.mxu0 %v184
    %200 = vmatprep.subr.mxu0 0.0
    %201 = vmatpush1.msra.mxu0 %v183
    %202 = vmatprep.subr.mxu0 0.0
    %203 = vmatpush1.msra.mxu0 %v182
    %204 = vmatprep.subr.mxu0 0.0
    %205 = vmatpush1.msra.mxu0 %v181
    %206 = vmatprep.subr.mxu0 0.0
    %207 = vmatpush1.msra.mxu0 %v180
    %208 = vmatprep.subr.mxu0 0.0
    %209 = vmatpush1.msra.mxu0 %v179
    %210 = vmatprep.subr.mxu0 0.0
    %211 = vmatpush1.msra.mxu0 %v178
    %212 = vmatprep.subr.mxu0 0.0
    %213 = vmatpush1.msra.mxu0 %v177
    %214 = vmatprep.subr.mxu0 0.0
    %215 = vmatpush1.msra.mxu0 %v176
    %216 = vmatprep.subr.mxu0 0.0
    %217 = vmatpush1.msra.mxu0 %v175
    %218 = vmatprep.subr.mxu0 0.0
    %219 = vmatpush1.msra.mxu0 %v174
    %220 = vmatprep.subr.mxu0 0.0
    %221 = vmatpush1.msra.mxu0 %v173
    %222 = vmatprep.subr.mxu0 0.0
    %223 = vmatpush1.msra.mxu0 %v172
    %224 = vmatprep.subr.mxu0 0.0
    %225 = vmatpush1.msra.mxu0 %v171
    %226 = vmatprep.subr.mxu0 0.0
    %227 = vmatpush2.msra.mxu0 0.0
    %228 = vmatprep.subr.mxu0 0.0
    %229 = vmatpush2.msra.mxu0 0.0
    %230 = vmatprep.subr.mxu0 0.0
    %231 = vmatpush2.msra.mxu0 0.0
    %232 = vmatprep.subr.mxu0 0.0
    %233 = vmatpush2.msra.mxu0 0.0
    %234 = vmatprep.subr.mxu0 0.0
    %235 = vmatpush2.msra.mxu0 0.0
    %236 = vmatprep.subr.mxu0 0.0
    %237 = vmatpush2.msra.mxu0 0.0
    %238 = vmatprep.subr.mxu0 0.0
    %239 = vmatpush2.msra.mxu0 0.0
    %240 = vmatprep.subr.mxu0 0.0
    %241 = vmatpush2.msra.mxu0 0.0
    %242 = vmatprep.subr.mxu0 0.0
    %243 = vmatpush2.msra.mxu0 0.0
    %244 = vmatprep.subr.mxu0 0.0
    %245 = vmatpush2.msra.mxu0 0.0
    %246 = vmatprep.subr.mxu0 0.0
    %247 = vmatpush2.msra.mxu0 0.0
    %248 = vmatprep.subr.mxu0 0.0
    %249 = vmatpush2.msra.mxu0 0.0
    %250 = vmatprep.subr.mxu0 0.0
    %251 = vmatpush2.msra.mxu0 0.0
    %252 = vmatprep.subr.mxu0 0.0
    %253 = vmatpush2.msra.mxu0 0.0
    %254 = vmatprep.subr.mxu0 0.0
    %255 = vmatpush2.msra.mxu0 0.0
    %256 = vmatprep.subr.mxu0 0.0
    %257 = vmatpush2.msra.mxu0 0.0
    %258 = vmatprep.mubr.f32.mxu0 0.0
    %259 = vmatmul.mubr.f32.gmra.mxu0 %v170
    %v260 = vpop.f32.mrf.mxu0
    %v261 = vadd.f32 %v192, %v260
    %v262 = vpop.f32.mrf.mxu0
    %263 = vdwg.mxu0
    %264 = vst [vmem:[%s7] sm:$0xff] %v261
    // Predicated region
    $region38: #{task_generator_forward.1} parent=1 // pred_check
      _
    $region39: #{task_generator_forward.1} parent=1 // pred_check_branch
      %266 = sbr.rel (0) target = $region41
    $region40: #{task_generator_forward.1} parent=1 // pred_region
      _
    $region41: #{task_generator_forward.1} parent=1 // pred_fallthru
      _
    // Predicated region
    $region42: #{task_generator_forward.1} parent=1 // pred_check
      _
    $region43: #{task_generator_forward.1} parent=1 // pred_check_branch
      %268 = sbr.rel (0) target = $region45
    $region44: #{task_generator_forward.1} parent=1 // pred_region
      _
    $region45: #{task_generator_forward.1} parent=1 // pred_fallthru
      _
    %269 = vsyncpa [#allocation3], 1
    %270 = vsyncpa [#allocation5], 1

</llo_original>
